<compile_context>
chip_gen: v7x
topology: tpu7x:2x2x1
jax: 0.10.0
libtpu: 0.0.40
codegen_flags: <defaults>
</compile_context>

<pallas_src>
import functools

import jax
import jax.numpy as jnp
from jax.experimental import pallas as pl
from jax.experimental.pallas import tpu as pltpu


def _round_up(n: int, m: int) -> int:
    return ((n + m - 1) // m) * m


def _ffn_kernel(x_ref, gamma_ref, beta_ref, w1_ref, b1_ref, w2_ref, b2_ref,
                o_ref, *, eps: float):
    # ---- LayerNorm over the last dim (f32) ----
    x = x_ref[...].astype(jnp.float32)                         # (TM, D)
    mean = jnp.mean(x, axis=-1, keepdims=True)
    centered = x - mean
    var = jnp.mean(centered * centered, axis=-1, keepdims=True)
    xn = centered * jax.lax.rsqrt(var + eps)
    xn = xn * gamma_ref[...] + beta_ref[...]                    # (TM, D) f32

    # ---- Linear1 (D -> 4D), bf16 MXU inputs, f32 accumulation ----
    h = jnp.dot(xn.astype(w1_ref.dtype), w1_ref[...],
                preferred_element_type=jnp.float32)
    h = h + b1_ref[...]                                         # (TM, 4D) f32
    h = h * jax.nn.sigmoid(h)                                   # Swish / SiLU

    # TODO(synk): Dropout is identity in eval mode; training-mode dropout with
    # pltpu.prng_random_bits could be added behind a flag.

    # ---- Linear2 (4D -> D), bf16 MXU inputs (bounds the live intermediate) ----
    y = jnp.dot(h.astype(w2_ref.dtype), w2_ref[...],
                preferred_element_type=jnp.float32)
    y = y + b2_ref[...]                                         # (TM, D) f32

    o_ref[...] = y.astype(o_ref.dtype)


def berp_pos_wise_feed_forward(x, gamma, beta, w1, b1, w2, b2,
                               *, eps: float = 1e-5, row_tile: int = 256,
                               matmul_dtype=jnp.bfloat16):
    """x: (B, S, D). Returns (B, S, D). Works for arbitrary B*S (rows padded)."""
    B, S, D = x.shape
    H = w1.shape[1]
    M = B * S

    # Effective row tile: large for throughput, but never bigger than the
    # (8-aligned) row count; always a multiple of 8 (sublane alignment).
    tm = min(_round_up(row_tile, 8), _round_up(M, 8))
    Mp = _round_up(M, tm)

    x2d = x.reshape(M, D)
    if Mp != M:
        # Zero-pad ragged rows; LayerNorm of a zero row is finite (eps in rsqrt)
        # and padded outputs are sliced off below.
        x2d = jnp.pad(x2d, ((0, Mp - M), (0, 0)))

    gamma2 = gamma.reshape(1, D).astype(jnp.float32)
    beta2 = beta.reshape(1, D).astype(jnp.float32)
    b1_2 = b1.reshape(1, H).astype(jnp.float32)
    b2_2 = b2.reshape(1, D).astype(jnp.float32)
    # Weights in bf16: full v6e/v7x MXU throughput, half the VMEM footprint.
    w1_c = w1.astype(matmul_dtype)
    w2_c = w2.astype(matmul_dtype)

    grid = (Mp // tm,)

    # Parameters are small relative to VMEM: feed full arrays to every step.
    full = lambda shape: pl.BlockSpec(shape, lambda i: (0, 0))

    out2d = pl.pallas_call(
        functools.partial(_ffn_kernel, eps=eps),
        out_shape=jax.ShapeDtypeStruct((Mp, D), x.dtype),
        grid_spec=pltpu.PrefetchScalarGridSpec(
            num_scalar_prefetch=0,
            grid=grid,
            in_specs=[
                pl.BlockSpec((tm, D), lambda i: (i, 0)),   # x rows
                full((1, D)),                              # gamma
                full((1, D)),                              # beta
                full((D, H)),                              # w1 (bf16)
                full((1, H)),                              # b1
                full((H, D)),                              # w2 (bf16)
                full((1, D)),                              # b2
            ],
            out_specs=pl.BlockSpec((tm, D), lambda i: (i, 0)),
        ),
        compiler_params=pltpu.CompilerParams(
            dimension_semantics=("parallel",),
            vmem_limit_bytes=64 * 1024 * 1024),
    )(x2d, gamma2, beta2, w1_c, b1_2, w2_c, b2_2)

    if Mp != M:
        out2d = out2d[:M]
    return out2d.reshape(B, S, D)


def init_params(key, encoder_dim: int, expansion_factor: int = 4):
    """Deterministic synthetic parameters matching the PyTorch module shapes."""
    hidden = encoder_dim * expansion_factor
    k1, k2, k3, k4 = jax.random.split(key, 4)
    # LayerNorm: weight=1, bias=0 (PyTorch default init)
    gamma = jnp.ones((encoder_dim,), jnp.float32)
    beta = jnp.zeros((encoder_dim,), jnp.float32)
    # Linear1: uniform(-1/sqrt(fan_in), 1/sqrt(fan_in)) like PyTorch
    lim1 = 1.0 / jnp.sqrt(jnp.float32(encoder_dim))
    w1 = jax.random.uniform(k1, (encoder_dim, hidden), jnp.float32, -lim1, lim1)
    b1 = jax.random.uniform(k2, (hidden,), jnp.float32, -lim1, lim1)
    # Linear2
    lim2 = 1.0 / jnp.sqrt(jnp.float32(hidden))
    w2 = jax.random.uniform(k3, (hidden, encoder_dim), jnp.float32, -lim2, lim2)
    b2 = jax.random.uniform(k4, (encoder_dim,), jnp.float32, -lim2, lim2)
    return gamma, beta, w1, b1, w2, b2


def reference(x, gamma, beta, w1, b1, w2, b2, eps=1e-5,
              matmul_dtype=jnp.bfloat16):
    """Precision-matched reference: f32 LN/bias/Swish, bf16 MXU operands."""
    mean = jnp.mean(x, axis=-1, keepdims=True)
    var = jnp.mean((x - mean) ** 2, axis=-1, keepdims=True)
    xn = (x - mean) * jax.lax.rsqrt(var + eps) * gamma + beta
    h = jnp.dot(xn.astype(matmul_dtype), w1.astype(matmul_dtype),
                preferred_element_type=jnp.float32) + b1
    h = h * jax.nn.sigmoid(h)
    y = jnp.dot(h.astype(matmul_dtype), w2.astype(matmul_dtype),
                preferred_element_type=jnp.float32) + b2
    return y


if __name__ == "__main__":
    # Small but lane-dense: encoder_dim multiple of 128 keeps stores unmasked
    # and the MXU K/N dims filled.
    batch, seq, encoder_dim, expansion = 2, 8, 128, 4

    key = jax.random.PRNGKey(0)
    kx, kp = jax.random.split(key)
    x = jax.random.normal(kx, (batch, seq, encoder_dim), jnp.float32)
    gamma, beta, w1, b1, w2, b2 = init_params(kp, encoder_dim, expansion)

    y = berp_pos_wise_feed_forward(x, gamma, beta, w1, b1, w2, b2)
    y = jax.block_until_ready(y)

    y_ref = reference(x, gamma, beta, w1, b1, w2, b2)
    assert y.shape == (batch, seq, encoder_dim)
    assert jnp.allclose(y, y_ref, atol=2e-3, rtol=2e-3), "mismatch vs reference"

    print("KERNEL_OK")
</pallas_src>

<mosaic_0001>
module attributes {stable_mosaic.version = 11 : i64} {
  func.func @_ffn_kernel(%arg0: i32, %arg1: memref<16x128xf32, #tpu.memory_space<vmem>>, %arg2: memref<1x128xf32, #tpu.memory_space<vmem>>, %arg3: memref<1x128xf32, #tpu.memory_space<vmem>>, %arg4: memref<128x512xbf16, #tpu.memory_space<vmem>>, %arg5: memref<1x512xf32, #tpu.memory_space<vmem>>, %arg6: memref<512x128xbf16, #tpu.memory_space<vmem>>, %arg7: memref<1x128xf32, #tpu.memory_space<vmem>>, %arg8: memref<16x128xf32, #tpu.memory_space<vmem>>) attributes {dimension_semantics = [#tpu.dimension_semantics<parallel>], iteration_bounds = array<i64: 1>, scalar_prefetch = 0 : i64, scratch_operands = 0 : i64, tpu.core_type = #tpu.core_type<tc>, window_params = [{transform_indices = @transform_0, window_bounds = array<i64: 16, 128>}, {pipeline_mode = #tpu.pipeline_mode<synchronous>, transform_indices = @transform_1, window_bounds = array<i64: 1, 128>}, {pipeline_mode = #tpu.pipeline_mode<synchronous>, transform_indices = @transform_2, window_bounds = array<i64: 1, 128>}, {pipeline_mode = #tpu.pipeline_mode<synchronous>, transform_indices = @transform_3, window_bounds = array<i64: 128, 512>}, {pipeline_mode = #tpu.pipeline_mode<synchronous>, transform_indices = @transform_4, window_bounds = array<i64: 1, 512>}, {pipeline_mode = #tpu.pipeline_mode<synchronous>, transform_indices = @transform_5, window_bounds = array<i64: 512, 128>}, {pipeline_mode = #tpu.pipeline_mode<synchronous>, transform_indices = @transform_6, window_bounds = array<i64: 1, 128>}, {transform_indices = @transform_7, window_bounds = array<i64: 16, 128>}]} {
    %c0 = arith.constant 0 : index
    %c0_0 = arith.constant 0 : index
    %0 = vector.load %arg1[%c0, %c0_0] : memref<16x128xf32, #tpu.memory_space<vmem>>, vector<16x128xf32>
    %cst = arith.constant dense<0.000000e+00> : vector<16xf32>
    %1 = vector.multi_reduction <add>, %0, %cst [1] : vector<16x128xf32> to vector<16xf32>
    %2 = vector.shape_cast %1 : vector<16xf32> to vector<16x1xf32>
    %cst_1 = arith.constant 1.280000e+02 : f32
    %3 = vector.broadcast %cst_1 : f32 to vector<16x1xf32>
    %4 = arith.divf %2, %3 : vector<16x1xf32>
    %5 = vector.broadcast %4 : vector<16x1xf32> to vector<16x128xf32>
    %6 = arith.subf %0, %5 : vector<16x128xf32>
    %7 = arith.mulf %6, %6 : vector<16x128xf32>
    %cst_2 = arith.constant dense<0.000000e+00> : vector<16xf32>
    %8 = vector.multi_reduction <add>, %7, %cst_2 [1] : vector<16x128xf32> to vector<16xf32>
    %9 = vector.shape_cast %8 : vector<16xf32> to vector<16x1xf32>
    %cst_3 = arith.constant 1.280000e+02 : f32
    %10 = vector.broadcast %cst_3 : f32 to vector<16x1xf32>
    %11 = arith.divf %9, %10 : vector<16x1xf32>
    %cst_4 = arith.constant 9.99999974E-6 : f32
    %12 = vector.broadcast %cst_4 : f32 to vector<16x1xf32>
    %13 = arith.addf %11, %12 : vector<16x1xf32>
    %14 = math.rsqrt %13 : vector<16x1xf32>
    %15 = vector.broadcast %14 : vector<16x1xf32> to vector<16x128xf32>
    %16 = arith.mulf %6, %15 : vector<16x128xf32>
    %c0_5 = arith.constant 0 : index
    %c0_6 = arith.constant 0 : index
    %17 = vector.load %arg2[%c0_5, %c0_6] : memref<1x128xf32, #tpu.memory_space<vmem>>, vector<1x128xf32>
    %18 = vector.broadcast %17 : vector<1x128xf32> to vector<16x128xf32>
    %19 = arith.mulf %16, %18 : vector<16x128xf32>
    %c0_7 = arith.constant 0 : index
    %c0_8 = arith.constant 0 : index
    %20 = vector.load %arg3[%c0_7, %c0_8] : memref<1x128xf32, #tpu.memory_space<vmem>>, vector<1x128xf32>
    %21 = vector.broadcast %20 : vector<1x128xf32> to vector<16x128xf32>
    %22 = arith.addf %19, %21 : vector<16x128xf32>
    %23 = arith.truncf %22 : vector<16x128xf32> to vector<16x128xbf16>
    %c0_9 = arith.constant 0 : index
    %c0_10 = arith.constant 0 : index
    %24 = vector.load %arg4[%c0_9, %c0_10] : memref<128x512xbf16, #tpu.memory_space<vmem>>, vector<128x512xbf16>
    %cst_11 = arith.constant dense<0.000000e+00> : vector<16x512xf32>
    %25 = tpu.matmul %23, %24, %cst_11 {dimension_numbers = #tpu.dot_dimension_numbers<[1], [0], [0], [1], [0, 0, 1, 1], [], []>} : vector<16x128xbf16>, vector<128x512xbf16>, vector<16x512xf32> -> vector<16x512xf32>
    %c0_12 = arith.constant 0 : index
    %c0_13 = arith.constant 0 : index
    %26 = vector.load %arg5[%c0_12, %c0_13] : memref<1x512xf32, #tpu.memory_space<vmem>>, vector<1x512xf32>
    %27 = vector.broadcast %26 : vector<1x512xf32> to vector<16x512xf32>
    %28 = arith.addf %25, %27 : vector<16x512xf32>
    %29 = arith.negf %28 : vector<16x512xf32>
    %30 = math.exp %29 : vector<16x512xf32>
    %cst_14 = arith.constant 1.000000e+00 : f32
    %31 = vector.broadcast %cst_14 : f32 to vector<16x512xf32>
    %32 = arith.addf %31, %30 : vector<16x512xf32>
    %33 = arith.divf %31, %32 : vector<16x512xf32>
    %34 = arith.mulf %28, %33 : vector<16x512xf32>
    %35 = arith.truncf %34 : vector<16x512xf32> to vector<16x512xbf16>
    %c0_15 = arith.constant 0 : index
    %c0_16 = arith.constant 0 : index
    %36 = vector.load %arg6[%c0_15, %c0_16] : memref<512x128xbf16, #tpu.memory_space<vmem>>, vector<512x128xbf16>
    %cst_17 = arith.constant dense<0.000000e+00> : vector<16x128xf32>
    %37 = tpu.matmul %35, %36, %cst_17 {dimension_numbers = #tpu.dot_dimension_numbers<[1], [0], [0], [1], [0, 0, 1, 1], [], []>} : vector<16x512xbf16>, vector<512x128xbf16>, vector<16x128xf32> -> vector<16x128xf32>
    %c0_18 = arith.constant 0 : index
    %c0_19 = arith.constant 0 : index
    %38 = vector.load %arg7[%c0_18, %c0_19] : memref<1x128xf32, #tpu.memory_space<vmem>>, vector<1x128xf32>
    %39 = vector.broadcast %38 : vector<1x128xf32> to vector<16x128xf32>
    %40 = arith.addf %37, %39 : vector<16x128xf32>
    %c0_20 = arith.constant 0 : index
    %c0_21 = arith.constant 0 : index
    %41 = vector.load %arg8[%c0_20, %c0_21] : memref<16x128xf32, #tpu.memory_space<vmem>>, vector<16x128xf32>
    tpu.vector_store %arg8[%c0_20, %c0_21], %40 {strides = array<i32>} : memref<16x128xf32, #tpu.memory_space<vmem>>, vector<16x128xf32>,
    return
  }
  func.func @transform_0(%arg0: i32) -> (i32, i32) {
    %c0_i32 = arith.constant 0 : i32
    %c0_i32_0 = arith.constant 0 : i32
    return %arg0, %c0_i32 : i32, i32
  }
  func.func @transform_1(%arg0: i32) -> (i32, i32) {
    %c0_i32 = arith.constant 0 : i32
    %c0_i32_0 = arith.constant 0 : i32
    %c0_i32_1 = arith.constant 0 : i32
    return %c0_i32, %c0_i32_0 : i32, i32
  }
  func.func @transform_2(%arg0: i32) -> (i32, i32) {
    %c0_i32 = arith.constant 0 : i32
    %c0_i32_0 = arith.constant 0 : i32
    %c0_i32_1 = arith.constant 0 : i32
    return %c0_i32, %c0_i32_0 : i32, i32
  }
  func.func @transform_3(%arg0: i32) -> (i32, i32) {
    %c0_i32 = arith.constant 0 : i32
    %c0_i32_0 = arith.constant 0 : i32
    %c0_i32_1 = arith.constant 0 : i32
    return %c0_i32, %c0_i32_0 : i32, i32
  }
  func.func @transform_4(%arg0: i32) -> (i32, i32) {
    %c0_i32 = arith.constant 0 : i32
    %c0_i32_0 = arith.constant 0 : i32
    %c0_i32_1 = arith.constant 0 : i32
    return %c0_i32, %c0_i32_0 : i32, i32
  }
  func.func @transform_5(%arg0: i32) -> (i32, i32) {
    %c0_i32 = arith.constant 0 : i32
    %c0_i32_0 = arith.constant 0 : i32
    %c0_i32_1 = arith.constant 0 : i32
    return %c0_i32, %c0_i32_0 : i32, i32
  }
  func.func @transform_6(%arg0: i32) -> (i32, i32) {
    %c0_i32 = arith.constant 0 : i32
    %c0_i32_0 = arith.constant 0 : i32
    %c0_i32_1 = arith.constant 0 : i32
    return %c0_i32, %c0_i32_0 : i32, i32
  }
  func.func @transform_7(%arg0: i32) -> (i32, i32) {
    %c0_i32 = arith.constant 0 : i32
    %c0_i32_0 = arith.constant 0 : i32
    return %arg0, %c0_i32 : i32, i32
  }
}

</mosaic_0001>

<llo_original>
// kernel: tpu_custom_call.1
$region0: #{tpu_custom_call.1}
  #allocation0 [shape = 'u32[]', space=smem, size = 0x4, offset = 0x4, fixed_abs, tag = 'smem constant byte address 0x4 - core index']
  #allocation1 [shape = 'u32[144,128]{1,0:T(1,128)}', space=vmem, size = 0x12000, scoped, tag = 'internal scratch']
  %s0 = inlined_call_operand.hbm [shape: f32[16,128], index: 0, kind: input, shape index: {}]
  %s1 = inlined_call_operand.hbm [shape: f32[1,128], index: 1, kind: input, shape index: {}]
  %s2 = inlined_call_operand.hbm [shape: f32[1,128], index: 2, kind: input, shape index: {}]
  %s3 = inlined_call_operand.hbm [shape: bf16[128,512], index: 3, kind: input, shape index: {}]
  %s4 = inlined_call_operand.hbm [shape: f32[1,512], index: 4, kind: input, shape index: {}]
  %s5 = inlined_call_operand.hbm [shape: bf16[512,128], index: 5, kind: input, shape index: {}]
  %s6 = inlined_call_operand.hbm [shape: f32[1,128], index: 6, kind: input, shape index: {}]
  %s7 = inlined_call_operand.hbm [shape: f32[16,128], index: 7, kind: output, shape index: {}]
  %s8 = sld [smem:[#allocation0]]
  $region66: #{tpu_custom_call.1} parent=0
    _
  %s10 = ssub.s32 1, %s8
  %s11 = scalar_select 0, %s10, %s8
  $region1: #{tpu_custom_call.1} parent=0
    #allocation2 [shape = 'u8[8192]{0}', space=vmem, size = 0x2000, scoped, tag = 'input window, operand 0, single buffered']
    #allocation3 [shape = 's32[1]{0}', space=sflag, size = 0x4, scoped, tag = 'scoped memory for tpu_custom_call.1']
    #allocation4 [shape = 's32[1]{0}', space=sflag, size = 0x4, scoped, tag = 'scoped memory for tpu_custom_call.1']
    #allocation5 [shape = 'u8[512]{0}', space=vmem, size = 0x400, scoped, tag = 'input window, operand 1, single buffered']
    #allocation6 [shape = 's32[1]{0}', space=sflag, size = 0x4, scoped, tag = 'scoped memory for tpu_custom_call.1']
    #allocation7 [shape = 'u8[512]{0}', space=vmem, size = 0x400, scoped, tag = 'input window, operand 2, single buffered']
    #allocation8 [shape = 'u8[131072]{0}', space=vmem, size = 0x20000, scoped, tag = 'input window, operand 3, single buffered']
    #allocation9 [shape = 's32[1]{0}', space=sflag, size = 0x4, scoped, tag = 'scoped memory for tpu_custom_call.1']
    #allocation10 [shape = 'u8[2048]{0}', space=vmem, size = 0x800, scoped, tag = 'input window, operand 4, single buffered']
    #allocation11 [shape = 'u8[131072]{0}', space=vmem, size = 0x20000, scoped, tag = 'input window, operand 5, single buffered']
    #allocation12 [shape = 's32[1]{0}', space=sflag, size = 0x4, scoped, tag = 'scoped memory for tpu_custom_call.1']
    #allocation13 [shape = 'u8[512]{0}', space=vmem, size = 0x400, scoped, tag = 'input window, operand 6, single buffered']
    #allocation14 [shape = 'u8[8192]{0}', space=vmem, size = 0x2000, scoped, tag = 'output window, operand 0, single buffered']
    %12 = vsyncpa [#allocation3], 0
    %13 = vsyncpa [#allocation6], 0
    %14 = vsyncpa [#allocation9], 0
    %15 = vsyncpa [#allocation12], 0
    %16 = vsyncpa [#allocation4], 0
    // Predicated region
    $region2: #{tpu_custom_call.1} parent=1 // pred_check
      _
    $region3: #{tpu_custom_call.1} parent=1 // pred_check_branch
      %18 = sbr.rel (0) target = $region5
    $region4: #{tpu_custom_call.1} parent=1 // pred_region
      %s20 = ssub.s32 256, 256
      %21 = vsyncadd [#allocation3], %s20
      %s22 = sshll.u32 [#allocation2], 4
      %s23 = int_to_ptr.vmem [resolvable:$true] %s22
      %28 = dma.hbm_to_vmem [thread:$0]  %s0, 256, %s23, [#allocation3], 128, 128, 8
    $region5: #{tpu_custom_call.1} parent=1 // pred_fallthru
      _
    // Predicated region
    $region6: #{tpu_custom_call.1} parent=1 // pred_check
      _
    $region7: #{tpu_custom_call.1} parent=1 // pred_check_branch
      %30 = sbr.rel (0) target = $region9
    $region8: #{tpu_custom_call.1} parent=1 // pred_region
      %s32 = ssub.s32 16, 16
      %33 = vsyncadd [#allocation6], %s32
      %s35 = sshll.u32 [#allocation5], 4
      %s36 = int_to_ptr.vmem [resolvable:$true] %s35
      %38 = dma.hbm_to_vmem [thread:$0]  %s1, 16, %s36, [#allocation6]
    $region9: #{tpu_custom_call.1} parent=1 // pred_fallthru
      _
    // Predicated region
    $region10: #{tpu_custom_call.1} parent=1 // pred_check
      _
    $region11: #{tpu_custom_call.1} parent=1 // pred_check_branch
      %40 = sbr.rel (0) target = $region13
    $region12: #{tpu_custom_call.1} parent=1 // pred_region
      %s42 = ssub.s32 16, 16
      %43 = vsyncadd [#allocation6], %s42
      %s45 = sshll.u32 [#allocation7], 4
      %s46 = int_to_ptr.vmem [resolvable:$true] %s45
      %48 = dma.hbm_to_vmem [thread:$0]  %s2, 16, %s46, [#allocation6]
    $region13: #{tpu_custom_call.1} parent=1 // pred_fallthru
      _
    // Predicated region
    $region14: #{tpu_custom_call.1} parent=1 // pred_check
      _
    $region15: #{tpu_custom_call.1} parent=1 // pred_check_branch
      %50 = sbr.rel (0) target = $region17
    $region16: #{tpu_custom_call.1} parent=1 // pred_region
      %s52 = ssub.s32 4096, 4096
      %53 = vsyncadd [#allocation9], %s52
      %s54 = sshll.u32 [#allocation8], 4
      %s55 = int_to_ptr.vmem [resolvable:$true] %s54
      %60 = dma.hbm_to_vmem [thread:$0]  %s3, 4096, %s55, [#allocation9], 256, 256, 16
    $region17: #{tpu_custom_call.1} parent=1 // pred_fallthru
      _
    // Predicated region
    $region18: #{tpu_custom_call.1} parent=1 // pred_check
      _
    $region19: #{tpu_custom_call.1} parent=1 // pred_check_branch
      %62 = sbr.rel (0) target = $region21
    $region20: #{tpu_custom_call.1} parent=1 // pred_region
      %s64 = ssub.s32 64, 64
      %65 = vsyncadd [#allocation9], %s64
      %s67 = sshll.u32 [#allocation10], 4
      %s68 = int_to_ptr.vmem [resolvable:$true] %s67
      %70 = dma.hbm_to_vmem [thread:$0]  %s4, 64, %s68, [#allocation9]
    $region21: #{tpu_custom_call.1} parent=1 // pred_fallthru
      _
    // Predicated region
    $region22: #{tpu_custom_call.1} parent=1 // pred_check
      _
    $region23: #{tpu_custom_call.1} parent=1 // pred_check_branch
      %72 = sbr.rel (0) target = $region25
    $region24: #{tpu_custom_call.1} parent=1 // pred_region
      %s74 = ssub.s32 4096, 4096
      %75 = vsyncadd [#allocation12], %s74
      %s76 = sshll.u32 [#allocation11], 4
      %s77 = int_to_ptr.vmem [resolvable:$true] %s76
      %82 = dma.hbm_to_vmem [thread:$0]  %s5, 4096, %s77, [#allocation12], 64, 64, 4
    $region25: #{tpu_custom_call.1} parent=1 // pred_fallthru
      _
    // Predicated region
    $region26: #{tpu_custom_call.1} parent=1 // pred_check
      _
    $region27: #{tpu_custom_call.1} parent=1 // pred_check_branch
      %84 = sbr.rel (0) target = $region29
    $region28: #{tpu_custom_call.1} parent=1 // pred_region
      %s86 = ssub.s32 16, 16
      %87 = vsyncadd [#allocation12], %s86
      %s89 = sshll.u32 [#allocation13], 4
      %s90 = int_to_ptr.vmem [resolvable:$true] %s89
      %92 = dma.hbm_to_vmem [thread:$0]  %s6, 16, %s90, [#allocation12]
    $region29: #{tpu_custom_call.1} parent=1 // pred_fallthru
      _
    // Predicated region
    $region30: #{tpu_custom_call.1} parent=1 // pred_check
      _
    $region31: #{tpu_custom_call.1} parent=1 // pred_check_branch
      %94 = sbr.rel (0) target = $region33
    $region32: #{tpu_custom_call.1} parent=1 // pred_region
      %95 = dma.done [#allocation3], 256
    $region33: #{tpu_custom_call.1} parent=1 // pred_fallthru
      _
    // Predicated region
    $region34: #{tpu_custom_call.1} parent=1 // pred_check
      _
    $region35: #{tpu_custom_call.1} parent=1 // pred_check_branch
      %97 = sbr.rel (0) target = $region37
    $region36: #{tpu_custom_call.1} parent=1 // pred_region
      %98 = dma.done [#allocation6], 16
    $region37: #{tpu_custom_call.1} parent=1 // pred_fallthru
      _
    // Predicated region
    $region38: #{tpu_custom_call.1} parent=1 // pred_check
      _
    $region39: #{tpu_custom_call.1} parent=1 // pred_check_branch
      %100 = sbr.rel (0) target = $region41
    $region40: #{tpu_custom_call.1} parent=1 // pred_region
      %101 = dma.done [#allocation6], 16
    $region41: #{tpu_custom_call.1} parent=1 // pred_fallthru
      _
    // Predicated region
    $region42: #{tpu_custom_call.1} parent=1 // pred_check
      _
    $region43: #{tpu_custom_call.1} parent=1 // pred_check_branch
      %103 = sbr.rel (0) target = $region45
    $region44: #{tpu_custom_call.1} parent=1 // pred_region
      %104 = dma.done [#allocation9], 4096
    $region45: #{tpu_custom_call.1} parent=1 // pred_fallthru
      _
    // Predicated region
    $region46: #{tpu_custom_call.1} parent=1 // pred_check
      _
    $region47: #{tpu_custom_call.1} parent=1 // pred_check_branch
      %106 = sbr.rel (0) target = $region49
    $region48: #{tpu_custom_call.1} parent=1 // pred_region
      %107 = dma.done [#allocation9], 64
    $region49: #{tpu_custom_call.1} parent=1 // pred_fallthru
      _
    // Predicated region
    $region50: #{tpu_custom_call.1} parent=1 // pred_check
      _
    $region51: #{tpu_custom_call.1} parent=1 // pred_check_branch
      %109 = sbr.rel (0) target = $region53
    $region52: #{tpu_custom_call.1} parent=1 // pred_region
      %110 = dma.done [#allocation12], 4096
    $region53: #{tpu_custom_call.1} parent=1 // pred_fallthru
      _
    // Predicated region
    $region54: #{tpu_custom_call.1} parent=1 // pred_check
      _
    $region55: #{tpu_custom_call.1} parent=1 // pred_check_branch
      %112 = sbr.rel (0) target = $region57
    $region56: #{tpu_custom_call.1} parent=1 // pred_region
      %113 = dma.done [#allocation12], 16
    $region57: #{tpu_custom_call.1} parent=1 // pred_fallthru
      _
    %v115 = vld [vmem:[#allocation2] sm:$0xff]
    %v116 = vld [vmem:[#allocation2 + $0x8] sm:$0xff]
    %117 = vadd.xlane.f32.xlu0 %v115
    %v118 = vpop.xlane.xlu0 %117
    %119 = vadd.xlane.f32.xlu0 %v116
    %v120 = vpop.xlane.xlu0 %119
    %v121 = vrcp.pop 128.0
    %v122 = vmul.f32 %v118, %v121
    %v123 = vmul.f32 %v120, %v121
    %v124 = vsub.f32 %v115, %v122
    %v125 = vsub.f32 %v116, %v123
    %v126 = vmul.f32 %v124, %v124
    %v127 = vmul.f32 %v125, %v125
    %128 = vadd.xlane.f32.xlu0 %v126
    %v129 = vpop.xlane.xlu0 %128
    %130 = vadd.xlane.f32.xlu0 %v127
    %v131 = vpop.xlane.xlu0 %130
    %v132 = vmul.f32 %v129, %v121
    %v133 = vmul.f32 %v131, %v121
    %v134 = vadd.f32 %v132, 1e-05
    %v135 = vadd.f32 %v133, 1e-05
    %v136 = vrsqrt.pop %v134
    %v137 = vrsqrt.pop %v135
    %v138 = vmul.f32 %v124, %v136
    %v139 = vmul.f32 %v125, %v137
    %v140 = vld [vmem:[#allocation5] sm:$0x1]
    %v142 = vlaneseq
    %v143 = vshrl.u32 %v142, 7
    %v144 = vsub.s32 0, %v143
    %v145 = vrot.slane %v140, %v144
    %v147 = vmul.f32 %v138, %v145
    %v148 = vmul.f32 %v139, %v145
    %v149 = vld [vmem:[#allocation7] sm:$0x1]
    %v151 = vlaneseq
    %v152 = vshrl.u32 %v151, 7
    %v153 = vsub.s32 0, %v152
    %v154 = vrot.slane %v149, %v153
    %v156 = vadd.f32 %v147, %v154
    %v157 = vadd.f32 %v148, %v154
    %v158 = vpack.c.bf16 %v157, %v156
    %v159 = vld [vmem:[#allocation8] sm:$0xff]
    %v160 = vld [vmem:[#allocation8 + $0x8] sm:$0xff]
    %v161 = vld [vmem:[#allocation8 + $0x10] sm:$0xff]
    %v162 = vld [vmem:[#allocation8 + $0x18] sm:$0xff]
    %v163 = vld [vmem:[#allocation8 + $0x20] sm:$0xff]
    %v164 = vld [vmem:[#allocation8 + $0x28] sm:$0xff]
    %v165 = vld [vmem:[#allocation8 + $0x30] sm:$0xff]
    %v166 = vld [vmem:[#allocation8 + $0x38] sm:$0xff]
    %v167 = vld [vmem:[#allocation8 + $0x40] sm:$0xff]
    %v168 = vld [vmem:[#allocation8 + $0x48] sm:$0xff]
    %v169 = vld [vmem:[#allocation8 + $0x50] sm:$0xff]
    %v170 = vld [vmem:[#allocation8 + $0x58] sm:$0xff]
    %v171 = vld [vmem:[#allocation8 + $0x60] sm:$0xff]
    %v172 = vld [vmem:[#allocation8 + $0x68] sm:$0xff]
    %v173 = vld [vmem:[#allocation8 + $0x70] sm:$0xff]
    %v174 = vld [vmem:[#allocation8 + $0x78] sm:$0xff]
    %v175 = vld [vmem:[#allocation8 + $0x80] sm:$0xff]
    %v176 = vld [vmem:[#allocation8 + $0x88] sm:$0xff]
    %v177 = vld [vmem:[#allocation8 + $0x90] sm:$0xff]
    %v178 = vld [vmem:[#allocation8 + $0x98] sm:$0xff]
    %v179 = vld [vmem:[#allocation8 + $0xa0] sm:$0xff]
    %v180 = vld [vmem:[#allocation8 + $0xa8] sm:$0xff]
    %v181 = vld [vmem:[#allocation8 + $0xb0] sm:$0xff]
    %v182 = vld [vmem:[#allocation8 + $0xb8] sm:$0xff]
    %v183 = vld [vmem:[#allocation8 + $0xc0] sm:$0xff]
    %v184 = vld [vmem:[#allocation8 + $0xc8] sm:$0xff]
    %v185 = vld [vmem:[#allocation8 + $0xd0] sm:$0xff]
    %v186 = vld [vmem:[#allocation8 + $0xd8] sm:$0xff]
    %v187 = vld [vmem:[#allocation8 + $0xe0] sm:$0xff]
    %v188 = vld [vmem:[#allocation8 + $0xe8] sm:$0xff]
    %v189 = vld [vmem:[#allocation8 + $0xf0] sm:$0xff]
    %v190 = vld [vmem:[#allocation8 + $0xf8] sm:$0xff]
    %v191 = vld [vmem:[#allocation10] sm:$0xf]
    %v193 = vlaneseq
    %v194 = vshrl.u32 %v193, 7
    %v195 = vsub.s32 0, %v194
    %v196 = vrot.slane %v191, %v195
    %v197 = vlaneseq
    %v198 = vshrl.u32 %v197, 7
    %v199 = vsub.s32 1, %v198
    %v200 = vrot.slane %v191, %v199
    %v201 = vlaneseq
    %v202 = vshrl.u32 %v201, 7
    %v203 = vsub.s32 2, %v202
    %v204 = vrot.slane %v191, %v203
    %v205 = vlaneseq
    %v206 = vshrl.u32 %v205, 7
    %v207 = vsub.s32 3, %v206
    %v208 = vrot.slane %v191, %v207
    %v245 = vunpack.c.l.b16 %v159
    %v246 = vunpack.c.h.b16 %v159
    %v247 = vunpack.c.l.b16 %v160
    %v248 = vunpack.c.h.b16 %v160
    %v249 = vunpack.c.l.b16 %v161
    %v250 = vunpack.c.h.b16 %v161
    %v251 = vunpack.c.l.b16 %v162
    %v252 = vunpack.c.h.b16 %v162
    %v253 = vunpack.c.l.b16 %v163
    %v254 = vunpack.c.h.b16 %v163
    %v255 = vunpack.c.l.b16 %v164
    %v256 = vunpack.c.h.b16 %v164
    %v257 = vunpack.c.l.b16 %v165
    %v258 = vunpack.c.h.b16 %v165
    %v259 = vunpack.c.l.b16 %v166
    %v260 = vunpack.c.h.b16 %v166
    %v261 = vunpack.c.l.b16 %v167
    %v262 = vunpack.c.h.b16 %v167
    %v263 = vunpack.c.l.b16 %v168
    %v264 = vunpack.c.h.b16 %v168
    %v265 = vunpack.c.l.b16 %v169
    %v266 = vunpack.c.h.b16 %v169
    %v267 = vunpack.c.l.b16 %v170
    %v268 = vunpack.c.h.b16 %v170
    %v269 = vunpack.c.l.b16 %v171
    %v270 = vunpack.c.h.b16 %v171
    %v271 = vunpack.c.l.b16 %v172
    %v272 = vunpack.c.h.b16 %v172
    %v273 = vunpack.c.l.b16 %v173
    %v274 = vunpack.c.h.b16 %v173
    %v275 = vunpack.c.l.b16 %v174
    %v276 = vunpack.c.h.b16 %v174
    %v277 = vunpack.c.l.b16 %v175
    %v278 = vunpack.c.h.b16 %v175
    %v279 = vunpack.c.l.b16 %v176
    %v280 = vunpack.c.h.b16 %v176
    %v281 = vunpack.c.l.b16 %v177
    %v282 = vunpack.c.h.b16 %v177
    %v283 = vunpack.c.l.b16 %v178
    %v284 = vunpack.c.h.b16 %v178
    %v285 = vunpack.c.l.b16 %v179
    %v286 = vunpack.c.h.b16 %v179
    %v287 = vunpack.c.l.b16 %v180
    %v288 = vunpack.c.h.b16 %v180
    %v289 = vunpack.c.l.b16 %v181
    %v290 = vunpack.c.h.b16 %v181
    %v291 = vunpack.c.l.b16 %v182
    %v292 = vunpack.c.h.b16 %v182
    %v293 = vunpack.c.l.b16 %v183
    %v294 = vunpack.c.h.b16 %v183
    %v295 = vunpack.c.l.b16 %v184
    %v296 = vunpack.c.h.b16 %v184
    %v297 = vunpack.c.l.b16 %v185
    %v298 = vunpack.c.h.b16 %v185
    %v299 = vunpack.c.l.b16 %v186
    %v300 = vunpack.c.h.b16 %v186
    %v301 = vunpack.c.l.b16 %v187
    %v302 = vunpack.c.h.b16 %v187
    %v303 = vunpack.c.l.b16 %v188
    %v304 = vunpack.c.h.b16 %v188
    %v305 = vunpack.c.l.b16 %v189
    %v306 = vunpack.c.h.b16 %v189
    %v307 = vunpack.c.l.b16 %v190
    %v308 = vunpack.c.h.b16 %v190
    %v309 = vpack.c.b16 %v249, %v245
    %v310 = vpack.c.b16 %v250, %v246
    %v311 = vpack.c.b16 %v251, %v247
    %v312 = vpack.c.b16 %v252, %v248
    %v313 = vpack.c.b16 %v257, %v253
    %v314 = vpack.c.b16 %v258, %v254
    %v315 = vpack.c.b16 %v259, %v255
    %v316 = vpack.c.b16 %v260, %v256
    %v317 = vpack.c.b16 %v265, %v261
    %v318 = vpack.c.b16 %v266, %v262
    %v319 = vpack.c.b16 %v267, %v263
    %v320 = vpack.c.b16 %v268, %v264
    %v321 = vpack.c.b16 %v273, %v269
    %v322 = vpack.c.b16 %v274, %v270
    %v323 = vpack.c.b16 %v275, %v271
    %v324 = vpack.c.b16 %v276, %v272
    %v325 = vpack.c.b16 %v281, %v277
    %v326 = vpack.c.b16 %v282, %v278
    %v327 = vpack.c.b16 %v283, %v279
    %v328 = vpack.c.b16 %v284, %v280
    %v329 = vpack.c.b16 %v289, %v285
    %v330 = vpack.c.b16 %v290, %v286
    %v331 = vpack.c.b16 %v291, %v287
    %v332 = vpack.c.b16 %v292, %v288
    %v333 = vpack.c.b16 %v297, %v293
    %v334 = vpack.c.b16 %v298, %v294
    %v335 = vpack.c.b16 %v299, %v295
    %v336 = vpack.c.b16 %v300, %v296
    %v337 = vpack.c.b16 %v305, %v301
    %v338 = vpack.c.b16 %v306, %v302
    %v339 = vpack.c.b16 %v307, %v303
    %v340 = vpack.c.b16 %v308, %v304
    %373 = vmatprep.subr.bf16.mxu0 %v310
    %374 = vmatpush1.bf16.msra.mxu0 %v309
    %375 = vmatprep.subr.bf16.mxu0 %v314
    %376 = vmatpush1.bf16.msra.mxu0 %v313
    %377 = vmatprep.subr.bf16.mxu0 %v318
    %378 = vmatpush1.bf16.msra.mxu0 %v317
    %379 = vmatprep.subr.bf16.mxu0 %v322
    %380 = vmatpush1.bf16.msra.mxu0 %v321
    %381 = vmatprep.subr.bf16.mxu0 %v326
    %382 = vmatpush1.bf16.msra.mxu0 %v325
    %383 = vmatprep.subr.bf16.mxu0 %v330
    %384 = vmatpush1.bf16.msra.mxu0 %v329
    %385 = vmatprep.subr.bf16.mxu0 %v334
    %386 = vmatpush1.bf16.msra.mxu0 %v333
    %387 = vmatprep.subr.bf16.mxu0 %v338
    %388 = vmatpush1.bf16.msra.mxu0 %v337
    %389 = vmatprep.subr.bf16.mxu0 0
    %390 = vmatpush1.bf16.msra.mxu0 0
    %391 = vmatprep.subr.bf16.mxu0 0
    %392 = vmatpush1.bf16.msra.mxu0 0
    %393 = vmatprep.subr.bf16.mxu0 0
    %394 = vmatpush1.bf16.msra.mxu0 0
    %395 = vmatprep.subr.bf16.mxu0 0
    %396 = vmatpush1.bf16.msra.mxu0 0
    %397 = vmatprep.subr.bf16.mxu0 0
    %398 = vmatpush1.bf16.msra.mxu0 0
    %399 = vmatprep.subr.bf16.mxu0 0
    %400 = vmatpush1.bf16.msra.mxu0 0
    %401 = vmatprep.subr.bf16.mxu0 0
    %402 = vmatpush1.bf16.msra.mxu0 0
    %403 = vmatprep.subr.bf16.mxu0 0
    %404 = vmatpush1.bf16.msra.mxu0 0
    %405 = vmatprep.mubr.bf16.mxu0 0
    %406 = vmatmul.mubr.bf16.gmra.mrb[0].mxu0 %v158
    %v407 = vpop.f32.mrb[0].mxu0
    %v408 = vadd.f32 %v196, %v407
    %v409 = vpop.f32.mrb[0].mxu0
    %v410 = vadd.f32 %v200, %v409
    %v411 = vpop.f32.mrb[0].mxu0
    %v412 = vadd.f32 %v196, %v411
    %v413 = vpop.f32.mrb[0].mxu0
    %v414 = vadd.f32 %v200, %v413
    %415 = vdwg.mxu0
    %416 = vmatprep.subr.bf16.mxu0 %v312
    %417 = vmatpush1.bf16.msra.mxu0 %v311
    %418 = vmatprep.subr.bf16.mxu0 %v316
    %419 = vmatpush1.bf16.msra.mxu0 %v315
    %420 = vmatprep.subr.bf16.mxu0 %v320
    %421 = vmatpush1.bf16.msra.mxu0 %v319
    %422 = vmatprep.subr.bf16.mxu0 %v324
    %423 = vmatpush1.bf16.msra.mxu0 %v323
    %424 = vmatprep.subr.bf16.mxu0 %v328
    %425 = vmatpush1.bf16.msra.mxu0 %v327
    %426 = vmatprep.subr.bf16.mxu0 %v332
    %427 = vmatpush1.bf16.msra.mxu0 %v331
    %428 = vmatprep.subr.bf16.mxu0 %v336
    %429 = vmatpush1.bf16.msra.mxu0 %v335
    %430 = vmatprep.subr.bf16.mxu0 %v340
    %431 = vmatpush1.bf16.msra.mxu0 %v339
    %432 = vmatprep.subr.bf16.mxu0 0
    %433 = vmatpush1.bf16.msra.mxu0 0
    %434 = vmatprep.subr.bf16.mxu0 0
    %435 = vmatpush1.bf16.msra.mxu0 0
    %436 = vmatprep.subr.bf16.mxu0 0
    %437 = vmatpush1.bf16.msra.mxu0 0
    %438 = vmatprep.subr.bf16.mxu0 0
    %439 = vmatpush1.bf16.msra.mxu0 0
    %440 = vmatprep.subr.bf16.mxu0 0
    %441 = vmatpush1.bf16.msra.mxu0 0
    %442 = vmatprep.subr.bf16.mxu0 0
    %443 = vmatpush1.bf16.msra.mxu0 0
    %444 = vmatprep.subr.bf16.mxu0 0
    %445 = vmatpush1.bf16.msra.mxu0 0
    %446 = vmatprep.subr.bf16.mxu0 0
    %447 = vmatpush1.bf16.msra.mxu0 0
    %448 = vmatprep.mubr.bf16.mxu0 0
    %449 = vmatmul.mubr.bf16.gmra.mrb[0].mxu0 %v158
    %v450 = vpop.f32.mrb[0].mxu0
    %v451 = vadd.f32 %v204, %v450
    %v452 = vpop.f32.mrb[0].mxu0
    %v453 = vadd.f32 %v208, %v452
    %v454 = vpop.f32.mrb[0].mxu0
    %v455 = vadd.f32 %v204, %v454
    %v456 = vpop.f32.mrb[0].mxu0
    %v457 = vadd.f32 %v208, %v456
    %458 = vdwg.mxu0
    %v459 = vxor.u32 %v408, 2147483648
    %v460 = vxor.u32 %v410, 2147483648
    %v461 = vxor.u32 %v451, 2147483648
    %v462 = vxor.u32 %v453, 2147483648
    %v463 = vxor.u32 %v412, 2147483648
    %v464 = vxor.u32 %v414, 2147483648
    %v465 = vxor.u32 %v455, 2147483648
    %v466 = vxor.u32 %v457, 2147483648
    %v467 = vmul.f32 %v459, 1.442695
    %v468 = vpow.pop %v467
    %v469 = vmul.f32 %v460, 1.442695
    %v470 = vpow.pop %v469
    %v471 = vmul.f32 %v461, 1.442695
    %v472 = vpow.pop %v471
    %v473 = vmul.f32 %v462, 1.442695
    %v474 = vpow.pop %v473
    %v475 = vmul.f32 %v463, 1.442695
    %v476 = vpow.pop %v475
    %v477 = vmul.f32 %v464, 1.442695
    %v478 = vpow.pop %v477
    %v479 = vmul.f32 %v465, 1.442695
    %v480 = vpow.pop %v479
    %v481 = vmul.f32 %v466, 1.442695
    %v482 = vpow.pop %v481
    %v483 = vadd.f32 %v468, 1.0
    %v484 = vadd.f32 %v470, 1.0
    %v485 = vadd.f32 %v472, 1.0
    %v486 = vadd.f32 %v474, 1.0
    %v487 = vadd.f32 %v476, 1.0
    %v488 = vadd.f32 %v478, 1.0
    %v489 = vadd.f32 %v480, 1.0
    %v490 = vadd.f32 %v482, 1.0
    %v491 = vrcp.pop %v483
    %v492 = vmul.f32 1.0, %v491
    %v493 = vrcp.pop %v484
    %v494 = vmul.f32 1.0, %v493
    %v495 = vrcp.pop %v485
    %v496 = vmul.f32 1.0, %v495
    %v497 = vrcp.pop %v486
    %v498 = vmul.f32 1.0, %v497
    %v499 = vrcp.pop %v487
    %v500 = vmul.f32 1.0, %v499
    %v501 = vrcp.pop %v488
    %v502 = vmul.f32 1.0, %v501
    %v503 = vrcp.pop %v489
    %v504 = vmul.f32 1.0, %v503
    %v505 = vrcp.pop %v490
    %v506 = vmul.f32 1.0, %v505
    %v507 = vmul.f32 %v408, %v492
    %v508 = vmul.f32 %v410, %v494
    %v509 = vmul.f32 %v451, %v496
    %v510 = vmul.f32 %v453, %v498
    %v511 = vmul.f32 %v412, %v500
    %v512 = vmul.f32 %v414, %v502
    %v513 = vmul.f32 %v455, %v504
    %v514 = vmul.f32 %v457, %v506
    %v515 = vpack.c.bf16 %v511, %v507
    %v516 = vpack.c.bf16 %v512, %v508
    %v517 = vpack.c.bf16 %v513, %v509
    %v518 = vpack.c.bf16 %v514, %v510
    %v519 = vld [vmem:[#allocation11] sm:$0xf]
    %v520 = vld [vmem:[#allocation11 + $0x4] sm:$0xf]
    %v521 = vld [vmem:[#allocation11 + $0x8] sm:$0xf]
    %v522 = vld [vmem:[#allocation11 + $0xc] sm:$0xf]
    %v523 = vld [vmem:[#allocation11 + $0x10] sm:$0xf]
    %v524 = vld [vmem:[#allocation11 + $0x14] sm:$0xf]
    %v525 = vld [vmem:[#allocation11 + $0x18] sm:$0xf]
    %v526 = vld [vmem:[#allocation11 + $0x1c] sm:$0xf]
    %v527 = vld [vmem:[#allocation11 + $0x20] sm:$0xf]
    %v528 = vld [vmem:[#allocation11 + $0x24] sm:$0xf]
    %v529 = vld [vmem:[#allocation11 + $0x28] sm:$0xf]
    %v530 = vld [vmem:[#allocation11 + $0x2c] sm:$0xf]
    %v531 = vld [vmem:[#allocation11 + $0x30] sm:$0xf]
    %v532 = vld [vmem:[#allocation11 + $0x34] sm:$0xf]
    %v533 = vld [vmem:[#allocation11 + $0x38] sm:$0xf]
    %v534 = vld [vmem:[#allocation11 + $0x3c] sm:$0xf]
    %v535 = vld [vmem:[#allocation11 + $0x40] sm:$0xf]
    %v536 = vld [vmem:[#allocation11 + $0x44] sm:$0xf]
    %v537 = vld [vmem:[#allocation11 + $0x48] sm:$0xf]
    %v538 = vld [vmem:[#allocation11 + $0x4c] sm:$0xf]
    %v539 = vld [vmem:[#allocation11 + $0x50] sm:$0xf]
    %v540 = vld [vmem:[#allocation11 + $0x54] sm:$0xf]
    %v541 = vld [vmem:[#allocation11 + $0x58] sm:$0xf]
    %v542 = vld [vmem:[#allocation11 + $0x5c] sm:$0xf]
    %v543 = vld [vmem:[#allocation11 + $0x60] sm:$0xf]
    %v544 = vld [vmem:[#allocation11 + $0x64] sm:$0xf]
    %v545 = vld [vmem:[#allocation11 + $0x68] sm:$0xf]
    %v546 = vld [vmem:[#allocation11 + $0x6c] sm:$0xf]
    %v547 = vld [vmem:[#allocation11 + $0x70] sm:$0xf]
    %v548 = vld [vmem:[#allocation11 + $0x74] sm:$0xf]
    %v549 = vld [vmem:[#allocation11 + $0x78] sm:$0xf]
    %v550 = vld [vmem:[#allocation11 + $0x7c] sm:$0xf]
    %v551 = vld [vmem:[#allocation11 + $0x80] sm:$0xf]
    %v552 = vld [vmem:[#allocation11 + $0x84] sm:$0xf]
    %v553 = vld [vmem:[#allocation11 + $0x88] sm:$0xf]
    %v554 = vld [vmem:[#allocation11 + $0x8c] sm:$0xf]
    %v555 = vld [vmem:[#allocation11 + $0x90] sm:$0xf]
    %v556 = vld [vmem:[#allocation11 + $0x94] sm:$0xf]
    %v557 = vld [vmem:[#allocation11 + $0x98] sm:$0xf]
    %v558 = vld [vmem:[#allocation11 + $0x9c] sm:$0xf]
    %v559 = vld [vmem:[#allocation11 + $0xa0] sm:$0xf]
    %v560 = vld [vmem:[#allocation11 + $0xa4] sm:$0xf]
    %v561 = vld [vmem:[#allocation11 + $0xa8] sm:$0xf]
    %v562 = vld [vmem:[#allocation11 + $0xac] sm:$0xf]
    %v563 = vld [vmem:[#allocation11 + $0xb0] sm:$0xf]
    %v564 = vld [vmem:[#allocation11 + $0xb4] sm:$0xf]
    %v565 = vld [vmem:[#allocation11 + $0xb8] sm:$0xf]
    %v566 = vld [vmem:[#allocation11 + $0xbc] sm:$0xf]
    %v567 = vld [vmem:[#allocation11 + $0xc0] sm:$0xf]
    %v568 = vld [vmem:[#allocation11 + $0xc4] sm:$0xf]
    %v569 = vld [vmem:[#allocation11 + $0xc8] sm:$0xf]
    %v570 = vld [vmem:[#allocation11 + $0xcc] sm:$0xf]
    %v571 = vld [vmem:[#allocation11 + $0xd0] sm:$0xf]
    %v572 = vld [vmem:[#allocation11 + $0xd4] sm:$0xf]
    %v573 = vld [vmem:[#allocation11 + $0xd8] sm:$0xf]
    %v574 = vld [vmem:[#allocation11 + $0xdc] sm:$0xf]
    %v575 = vld [vmem:[#allocation11 + $0xe0] sm:$0xf]
    %v576 = vld [vmem:[#allocation11 + $0xe4] sm:$0xf]
    %v577 = vld [vmem:[#allocation11 + $0xe8] sm:$0xf]
    %v578 = vld [vmem:[#allocation11 + $0xec] sm:$0xf]
    %v579 = vld [vmem:[#allocation11 + $0xf0] sm:$0xf]
    %v580 = vld [vmem:[#allocation11 + $0xf4] sm:$0xf]
    %v581 = vld [vmem:[#allocation11 + $0xf8] sm:$0xf]
    %v582 = vld [vmem:[#allocation11 + $0xfc] sm:$0xf]
    %v583 = vld [vmem:[#allocation13] sm:$0x1]
    %v585 = vlaneseq
    %v586 = vshrl.u32 %v585, 7
    %v587 = vsub.s32 0, %v586
    %v588 = vrot.slane %v583, %v587
    %v654 = vunpack.c.l.b16 %v519
    %v655 = vunpack.c.l.b16 %v520
    %v656 = vunpack.c.l.b16 %v521
    %v657 = vunpack.c.l.b16 %v522
    %v658 = vunpack.c.l.b16 %v523
    %v659 = vunpack.c.l.b16 %v524
    %v660 = vunpack.c.l.b16 %v525
    %v661 = vunpack.c.l.b16 %v526
    %v662 = vunpack.c.l.b16 %v527
    %v663 = vunpack.c.l.b16 %v528
    %v664 = vunpack.c.l.b16 %v529
    %v665 = vunpack.c.l.b16 %v530
    %v666 = vunpack.c.l.b16 %v531
    %v667 = vunpack.c.l.b16 %v532
    %v668 = vunpack.c.l.b16 %v533
    %v669 = vunpack.c.l.b16 %v534
    %v670 = vunpack.c.l.b16 %v535
    %v671 = vunpack.c.l.b16 %v536
    %v672 = vunpack.c.l.b16 %v537
    %v673 = vunpack.c.l.b16 %v538
    %v674 = vunpack.c.l.b16 %v539
    %v675 = vunpack.c.l.b16 %v540
    %v676 = vunpack.c.l.b16 %v541
    %v677 = vunpack.c.l.b16 %v542
    %v678 = vunpack.c.l.b16 %v543
    %v679 = vunpack.c.l.b16 %v544
    %v680 = vunpack.c.l.b16 %v545
    %v681 = vunpack.c.l.b16 %v546
    %v682 = vunpack.c.l.b16 %v547
    %v683 = vunpack.c.l.b16 %v548
    %v684 = vunpack.c.l.b16 %v549
    %v685 = vunpack.c.l.b16 %v550
    %v686 = vunpack.c.l.b16 %v551
    %v687 = vunpack.c.l.b16 %v552
    %v688 = vunpack.c.l.b16 %v553
    %v689 = vunpack.c.l.b16 %v554
    %v690 = vunpack.c.l.b16 %v555
    %v691 = vunpack.c.l.b16 %v556
    %v692 = vunpack.c.l.b16 %v557
    %v693 = vunpack.c.l.b16 %v558
    %v694 = vunpack.c.l.b16 %v559
    %v695 = vunpack.c.l.b16 %v560
    %v696 = vunpack.c.l.b16 %v561
    %v697 = vunpack.c.l.b16 %v562
    %v698 = vunpack.c.l.b16 %v563
    %v699 = vunpack.c.l.b16 %v564
    %v700 = vunpack.c.l.b16 %v565
    %v701 = vunpack.c.l.b16 %v566
    %v702 = vunpack.c.l.b16 %v567
    %v703 = vunpack.c.l.b16 %v568
    %v704 = vunpack.c.l.b16 %v569
    %v705 = vunpack.c.l.b16 %v570
    %v706 = vunpack.c.l.b16 %v571
    %v707 = vunpack.c.l.b16 %v572
    %v708 = vunpack.c.l.b16 %v573
    %v709 = vunpack.c.l.b16 %v574
    %v710 = vunpack.c.l.b16 %v575
    %v711 = vunpack.c.l.b16 %v576
    %v712 = vunpack.c.l.b16 %v577
    %v713 = vunpack.c.l.b16 %v578
    %v714 = vunpack.c.l.b16 %v579
    %v715 = vunpack.c.l.b16 %v580
    %v716 = vunpack.c.l.b16 %v581
    %v717 = vunpack.c.l.b16 %v582
    %v718 = vpack.c.b16 %v655, %v654
    %v719 = vpack.c.b16 %v657, %v656
    %v720 = vpack.c.b16 %v659, %v658
    %v721 = vpack.c.b16 %v661, %v660
    %v722 = vpack.c.b16 %v663, %v662
    %v723 = vpack.c.b16 %v665, %v664
    %v724 = vpack.c.b16 %v667, %v666
    %v725 = vpack.c.b16 %v669, %v668
    %v726 = vpack.c.b16 %v671, %v670
    %v727 = vpack.c.b16 %v673, %v672
    %v728 = vpack.c.b16 %v675, %v674
    %v729 = vpack.c.b16 %v677, %v676
    %v730 = vpack.c.b16 %v679, %v678
    %v731 = vpack.c.b16 %v681, %v680
    %v732 = vpack.c.b16 %v683, %v682
    %v733 = vpack.c.b16 %v685, %v684
    %v734 = vpack.c.b16 %v687, %v686
    %v735 = vpack.c.b16 %v689, %v688
    %v736 = vpack.c.b16 %v691, %v690
    %v737 = vpack.c.b16 %v693, %v692
    %v738 = vpack.c.b16 %v695, %v694
    %v739 = vpack.c.b16 %v697, %v696
    %v740 = vpack.c.b16 %v699, %v698
    %v741 = vpack.c.b16 %v701, %v700
    %v742 = vpack.c.b16 %v703, %v702
    %v743 = vpack.c.b16 %v705, %v704
    %v744 = vpack.c.b16 %v707, %v706
    %v745 = vpack.c.b16 %v709, %v708
    %v746 = vpack.c.b16 %v711, %v710
    %v747 = vpack.c.b16 %v713, %v712
    %v748 = vpack.c.b16 %v715, %v714
    %v749 = vpack.c.b16 %v717, %v716
    %782 = vmatprep.subr.bf16.mxu0 0
    %783 = vmatpush1.bf16.msra.mxu0 %v718
    %784 = vmatprep.subr.bf16.mxu0 0
    %785 = vmatpush1.bf16.msra.mxu0 %v719
    %786 = vmatprep.subr.bf16.mxu0 0
    %787 = vmatpush1.bf16.msra.mxu0 %v720
    %788 = vmatprep.subr.bf16.mxu0 0
    %789 = vmatpush1.bf16.msra.mxu0 %v721
    %790 = vmatprep.subr.bf16.mxu0 0
    %791 = vmatpush1.bf16.msra.mxu0 %v722
    %792 = vmatprep.subr.bf16.mxu0 0
    %793 = vmatpush1.bf16.msra.mxu0 %v723
    %794 = vmatprep.subr.bf16.mxu0 0
    %795 = vmatpush1.bf16.msra.mxu0 %v724
    %796 = vmatprep.subr.bf16.mxu0 0
    %797 = vmatpush1.bf16.msra.mxu0 %v725
    %798 = vmatprep.subr.bf16.mxu0 0
    %799 = vmatpush1.bf16.msra.mxu0 %v726
    %800 = vmatprep.subr.bf16.mxu0 0
    %801 = vmatpush1.bf16.msra.mxu0 %v727
    %802 = vmatprep.subr.bf16.mxu0 0
    %803 = vmatpush1.bf16.msra.mxu0 %v728
    %804 = vmatprep.subr.bf16.mxu0 0
    %805 = vmatpush1.bf16.msra.mxu0 %v729
    %806 = vmatprep.subr.bf16.mxu0 0
    %807 = vmatpush1.bf16.msra.mxu0 %v730
    %808 = vmatprep.subr.bf16.mxu0 0
    %809 = vmatpush1.bf16.msra.mxu0 %v731
    %810 = vmatprep.subr.bf16.mxu0 0
    %811 = vmatpush1.bf16.msra.mxu0 %v732
    %812 = vmatprep.subr.bf16.mxu0 0
    %813 = vmatpush1.bf16.msra.mxu0 %v733
    %814 = vmatprep.mubr.bf16.mxu0 %v516
    %815 = vmatmul.mubr.bf16.gmra.mrb[0].mxu0 %v515
    %v816 = vpop.f32.mrb[0].mxu0
    %v817 = vadd.f32 %v588, %v816
    %v818 = vpop.f32.mrb[0].mxu0
    %v819 = vpop.f32.mrb[0].mxu0
    %v820 = vadd.f32 %v588, %v819
    %v821 = vpop.f32.mrb[0].mxu0
    %822 = vdwg.mxu0
    %823 = vmatprep.subr.bf16.mxu0 0
    %824 = vmatpush1.bf16.msra.mxu0 %v734
    %825 = vmatprep.subr.bf16.mxu0 0
    %826 = vmatpush1.bf16.msra.mxu0 %v735
    %827 = vmatprep.subr.bf16.mxu0 0
    %828 = vmatpush1.bf16.msra.mxu0 %v736
    %829 = vmatprep.subr.bf16.mxu0 0
    %830 = vmatpush1.bf16.msra.mxu0 %v737
    %831 = vmatprep.subr.bf16.mxu0 0
    %832 = vmatpush1.bf16.msra.mxu0 %v738
    %833 = vmatprep.subr.bf16.mxu0 0
    %834 = vmatpush1.bf16.msra.mxu0 %v739
    %835 = vmatprep.subr.bf16.mxu0 0
    %836 = vmatpush1.bf16.msra.mxu0 %v740
    %837 = vmatprep.subr.bf16.mxu0 0
    %838 = vmatpush1.bf16.msra.mxu0 %v741
    %839 = vmatprep.subr.bf16.mxu0 0
    %840 = vmatpush1.bf16.msra.mxu0 %v742
    %841 = vmatprep.subr.bf16.mxu0 0
    %842 = vmatpush1.bf16.msra.mxu0 %v743
    %843 = vmatprep.subr.bf16.mxu0 0
    %844 = vmatpush1.bf16.msra.mxu0 %v744
    %845 = vmatprep.subr.bf16.mxu0 0
    %846 = vmatpush1.bf16.msra.mxu0 %v745
    %847 = vmatprep.subr.bf16.mxu0 0
    %848 = vmatpush1.bf16.msra.mxu0 %v746
    %849 = vmatprep.subr.bf16.mxu0 0
    %850 = vmatpush1.bf16.msra.mxu0 %v747
    %851 = vmatprep.subr.bf16.mxu0 0
    %852 = vmatpush1.bf16.msra.mxu0 %v748
    %853 = vmatprep.subr.bf16.mxu0 0
    %854 = vmatpush1.bf16.msra.mxu0 %v749
    %855 = vmatprep.mubr.bf16.mxu0 %v518
    %856 = vmatmul.mubr.bf16.gmra.mrb[0].mxu0 %v517
    %v857 = vpop.f32.mrb[0].mxu0
    %v858 = vadd.f32 %v817, %v857
    %v859 = vpop.f32.mrb[0].mxu0
    %v860 = vpop.f32.mrb[0].mxu0
    %v861 = vadd.f32 %v820, %v860
    %v862 = vpop.f32.mrb[0].mxu0
    %863 = vdwg.mxu0
    %864 = vst [vmem:[#allocation14] sm:$0xff] %v858
    %865 = vst [vmem:[#allocation14 + $0x8] sm:$0xff] %v861
    // Predicated region
    $region58: #{tpu_custom_call.1} parent=1 // pred_check
      _
    $region59: #{tpu_custom_call.1} parent=1 // pred_check_branch
      %867 = sbr.rel (0) target = $region61
    $region60: #{tpu_custom_call.1} parent=1 // pred_region
      %s869 = ssub.s32 256, 256
      %870 = vsyncadd [#allocation4], %s869
      %s871 = sshll.u32 [#allocation14], 4
      %s872 = int_to_ptr.vmem [resolvable:$true] %s871
      %877 = dma.vmem_to_hbm [thread:$0]  %s872, 256, %s7, [#allocation4], 128, 128, 8
    $region61: #{tpu_custom_call.1} parent=1 // pred_fallthru
      _
    // Predicated region
    $region62: #{tpu_custom_call.1} parent=1 // pred_check
      _
    $region63: #{tpu_custom_call.1} parent=1 // pred_check_branch
      %879 = sbr.rel (0) target = $region65
    $region64: #{tpu_custom_call.1} parent=1 // pred_region
      %880 = dma.done [#allocation4], 256
    $region65: #{tpu_custom_call.1} parent=1 // pred_fallthru
      _
    %881 = vsyncpa [#allocation3], 1
    %882 = vsyncpa [#allocation6], 1
    %883 = vsyncpa [#allocation9], 1
    %884 = vsyncpa [#allocation12], 1
    %885 = vsyncpa [#allocation4], 1

</llo_original>
